<compile_context>
chip_gen: v7x
topology: tpu7x:2x2x1
jax: 0.10.0
libtpu: 0.0.40
codegen_flags: <defaults>
</compile_context>

<pallas_src>
import jax
import jax.numpy as jnp
from jax.experimental import pallas as pl
from jax.experimental.pallas import tpu as pltpu

LANE = 128      # lane width (last dim)
SUBLANE = 8     # sublane width (second-to-last dim)


def _round_up(n, m):
    return ((n + m - 1) // m) * m


def _pad2d(a, rows, cols):
    return jnp.pad(a, ((0, rows - a.shape[0]), (0, cols - a.shape[1])))


# ---------------------------------------------------------------------------
# Kernels
# ---------------------------------------------------------------------------
def eeg_ae_fused_kernel(x_ref, w_ref, b_ref, out_ref):
    """Single fused affine transform: out = x @ W_eff + b_eff."""
    out = jnp.dot(x_ref[...], w_ref[...],
                  preferred_element_type=jnp.float32) + b_ref[...]
    out_ref[...] = out.astype(out_ref.dtype)


def eeg_ae_chained_kernel(x_ref,
                          w1_ref, b1_ref,
                          w2_ref, b2_ref,
                          w3_ref, b3_ref,
                          w4_ref, b4_ref,
                          out_ref):
    """Faithful 4-layer path: dec2(dec1(enc2(enc1(x)))).

    Matmul operands are cast to the weight dtype (bf16 on v6e/v7x if requested),
    accumulation stays f32. Bias adds broadcast once per tile from (1, F) rows.
    """
    h = jnp.dot(x_ref[...], w1_ref[...],
                preferred_element_type=jnp.float32) + b1_ref[...]
    h = jnp.dot(h.astype(w2_ref.dtype), w2_ref[...],
                preferred_element_type=jnp.float32) + b2_ref[...]
    h = jnp.dot(h.astype(w3_ref.dtype), w3_ref[...],
                preferred_element_type=jnp.float32) + b3_ref[...]
    h = jnp.dot(h.astype(w4_ref.dtype), w4_ref[...],
                preferred_element_type=jnp.float32) + b4_ref[...]
    out_ref[...] = h.astype(out_ref.dtype)


# ---------------------------------------------------------------------------
# Wrapper
# ---------------------------------------------------------------------------
def eeg_ae_forward(x, params, *, fused=True, block_batch=256,
                   compute_dtype=jnp.float32):
    """x: [batch, dim_input]. params: dict of transposed weights (in, out) and
    (1, out) biases, matching the PyTorch Linear stack."""
    batch, dim_input = x.shape
    dim_layer = params["w1_t"].shape[1]
    dim_z = params["w2_t"].shape[1]
    out_dtype = x.dtype

    # Lane-pad every feature dimension to a multiple of 128.
    f_in = _round_up(dim_input, LANE)
    f_layer = _round_up(dim_layer, LANE)
    f_z = _round_up(dim_z, LANE)

    # Batch tiling: tile is a multiple of 8 sublanes, capped at block_batch rows.
    padded_batch = _round_up(batch, SUBLANE)
    tb = min(block_batch, padded_batch)
    padded_batch = _round_up(padded_batch, tb)
    grid = (padded_batch // tb,)

    x_p = jnp.pad(x, ((0, padded_batch - batch),
                      (0, f_in - dim_input))).astype(compute_dtype)

    if fused:
        # Network is affine => fold the whole stack into one (dim_in x dim_in)
        # matmul + bias. Done once in fp32; numerically identical to the chained
        # path up to fp32 rounding.
        w_eff = params["w1_t"] @ params["w2_t"] @ params["w3_t"] @ params["w4_t"]
        b_eff = (((params["b1"] @ params["w2_t"] + params["b2"])
                  @ params["w3_t"] + params["b3"])
                 @ params["w4_t"] + params["b4"])
        weight_args = (
            _pad2d(w_eff, f_in, f_in).astype(compute_dtype),
            _pad2d(b_eff, 1, f_in).astype(jnp.float32),
        )
        kernel = eeg_ae_fused_kernel
    else:
        weight_args = (
            _pad2d(params["w1_t"], f_in, f_layer).astype(compute_dtype),
            _pad2d(params["b1"], 1, f_layer).astype(jnp.float32),
            _pad2d(params["w2_t"], f_layer, f_z).astype(compute_dtype),
            _pad2d(params["b2"], 1, f_z).astype(jnp.float32),
            _pad2d(params["w3_t"], f_z, f_layer).astype(compute_dtype),
            _pad2d(params["b3"], 1, f_layer).astype(jnp.float32),
            _pad2d(params["w4_t"], f_layer, f_in).astype(compute_dtype),
            _pad2d(params["b4"], 1, f_in).astype(jnp.float32),
        )
        kernel = eeg_ae_chained_kernel

    # Explicit specs (no late-bound closures). Weights/biases: full-array blocks
    # with a constant index_map so they stay resident in VMEM across batch tiles.
    x_spec = pl.BlockSpec((tb, f_in), lambda i: (i, 0))
    weight_specs = [pl.BlockSpec(a.shape, lambda i: (0, 0)) for a in weight_args]
    out_spec = pl.BlockSpec((tb, f_in), lambda i: (i, 0))

    out_padded = pl.pallas_call(
        kernel,
        grid=grid,
        in_specs=[x_spec] + weight_specs,
        out_specs=out_spec,
        out_shape=jax.ShapeDtypeStruct((padded_batch, f_in), out_dtype),
        compiler_params=pltpu.CompilerParams(
            # Batch axis is embarrassingly parallel -> lets v7x shard across its
            # 2 TensorCores. VMEM stays tiny at tb<=256 x 128 lanes, so the
            # default scoped limit is plenty (raise vmem_limit_bytes if scaling tb).
            dimension_semantics=("parallel",),
        ),
    )(x_p, *weight_args)

    return out_padded[:batch, :dim_input]


# ---------------------------------------------------------------------------
# Params / reference
# ---------------------------------------------------------------------------
def init_params(key, dim_input, dim_layer, dim_z):
    """Synthetic init. PyTorch Linear weight is (out, in); we store its transpose
    (in, out) so the kernel can do x @ W_T + b. Biases are (1, out) rows."""
    ks = jax.random.split(key, 8)
    scale = 0.1

    def w(k, shape):
        return scale * jax.random.normal(k, shape, dtype=jnp.float32)

    return {
        "w1_t": w(ks[0], (dim_input, dim_layer)), "b1": w(ks[1], (1, dim_layer)),
        "w2_t": w(ks[2], (dim_layer, dim_z)),     "b2": w(ks[3], (1, dim_z)),
        "w3_t": w(ks[4], (dim_z, dim_layer)),     "b3": w(ks[5], (1, dim_layer)),
        "w4_t": w(ks[6], (dim_layer, dim_input)), "b4": w(ks[7], (1, dim_input)),
    }


def reference_forward(x, params):
    """Plain-JAX reference mirroring the PyTorch forward exactly."""
    h1 = x @ params["w1_t"] + params["b1"]
    z = h1 @ params["w2_t"] + params["b2"]
    h2 = z @ params["w3_t"] + params["b3"]
    return h2 @ params["w4_t"] + params["b4"]


if __name__ == "__main__":
    batch, dim_input, dim_layer, dim_z = 8, 16, 32, 8

    key = jax.random.PRNGKey(0)
    k_x, k_p = jax.random.split(key)
    x = jax.random.normal(k_x, (batch, dim_input), dtype=jnp.float32)
    params = init_params(k_p, dim_input, dim_layer, dim_z)

    ref = reference_forward(x, params)

    # Default optimized path: fused affine, fp32.
    out_fused = jax.block_until_ready(eeg_ae_forward(x, params, fused=True))
    # Faithful 4-matmul path.
    out_chained = jax.block_until_ready(eeg_ae_forward(x, params, fused=False))
    # bf16-operand path (fast MXU path on v6e/v7x), f32 accumulation.
    out_bf16 = jax.block_until_ready(
        eeg_ae_forward(x, params, fused=True, compute_dtype=jnp.bfloat16))

    assert out_fused.shape == (batch, dim_input)
    assert jnp.allclose(out_chained, ref, atol=1e-5, rtol=1e-5)
    assert jnp.allclose(out_fused, ref, atol=1e-5, rtol=1e-5)
    assert jnp.allclose(out_bf16, ref, atol=5e-3, rtol=5e-2)

    print("KERNEL_OK")
</pallas_src>

<mosaic_0001>
module attributes {stable_mosaic.version = 11 : i64} {
  func.func @eeg_ae_fused_kernel(%arg0: i32, %arg1: memref<8x128xf32, #tpu.memory_space<vmem>>, %arg2: memref<128x128xf32, #tpu.memory_space<vmem>>, %arg3: memref<1x128xf32, #tpu.memory_space<vmem>>, %arg4: memref<8x128xf32, #tpu.memory_space<vmem>>) attributes {dimension_semantics = [#tpu.dimension_semantics<parallel>], iteration_bounds = array<i64: 1>, scalar_prefetch = 0 : i64, scratch_operands = 0 : i64, tpu.core_type = #tpu.core_type<tc>, window_params = [{transform_indices = @transform_0, window_bounds = array<i64: 8, 128>}, {pipeline_mode = #tpu.pipeline_mode<synchronous>, transform_indices = @transform_1, window_bounds = array<i64: 128, 128>}, {pipeline_mode = #tpu.pipeline_mode<synchronous>, transform_indices = @transform_2, window_bounds = array<i64: 1, 128>}, {transform_indices = @transform_3, window_bounds = array<i64: 8, 128>}]} {
    %c0 = arith.constant 0 : index
    %c0_0 = arith.constant 0 : index
    %0 = vector.load %arg1[%c0, %c0_0] : memref<8x128xf32, #tpu.memory_space<vmem>>, vector<8x128xf32>
    %c0_1 = arith.constant 0 : index
    %c0_2 = arith.constant 0 : index
    %1 = vector.load %arg2[%c0_1, %c0_2] : memref<128x128xf32, #tpu.memory_space<vmem>>, vector<128x128xf32>
    %cst = arith.constant dense<0.000000e+00> : vector<8x128xf32>
    %2 = tpu.matmul %0, %1, %cst {dimension_numbers = #tpu.dot_dimension_numbers<[1], [0], [0], [1], [0, 0, 1, 1], [], []>} : vector<8x128xf32>, vector<128x128xf32>, vector<8x128xf32> -> vector<8x128xf32>
    %c0_3 = arith.constant 0 : index
    %c0_4 = arith.constant 0 : index
    %3 = vector.load %arg3[%c0_3, %c0_4] : memref<1x128xf32, #tpu.memory_space<vmem>>, vector<1x128xf32>
    %4 = vector.broadcast %3 : vector<1x128xf32> to vector<8x128xf32>
    %5 = arith.addf %2, %4 : vector<8x128xf32>
    %c0_5 = arith.constant 0 : index
    %c0_6 = arith.constant 0 : index
    %6 = vector.load %arg4[%c0_5, %c0_6] : memref<8x128xf32, #tpu.memory_space<vmem>>, vector<8x128xf32>
    tpu.vector_store %arg4[%c0_5, %c0_6], %5 {strides = array<i32>} : memref<8x128xf32, #tpu.memory_space<vmem>>, vector<8x128xf32>,
    return
  }
  func.func @transform_0(%arg0: i32) -> (i32, i32) {
    %c0_i32 = arith.constant 0 : i32
    %c0_i32_0 = arith.constant 0 : i32
    return %arg0, %c0_i32 : i32, i32
  }
  func.func @transform_1(%arg0: i32) -> (i32, i32) {
    %c0_i32 = arith.constant 0 : i32
    %c0_i32_0 = arith.constant 0 : i32
    %c0_i32_1 = arith.constant 0 : i32
    return %c0_i32, %c0_i32_0 : i32, i32
  }
  func.func @transform_2(%arg0: i32) -> (i32, i32) {
    %c0_i32 = arith.constant 0 : i32
    %c0_i32_0 = arith.constant 0 : i32
    %c0_i32_1 = arith.constant 0 : i32
    return %c0_i32, %c0_i32_0 : i32, i32
  }
  func.func @transform_3(%arg0: i32) -> (i32, i32) {
    %c0_i32 = arith.constant 0 : i32
    %c0_i32_0 = arith.constant 0 : i32
    return %arg0, %c0_i32 : i32, i32
  }
}

</mosaic_0001>

<llo_original>
// kernel: tpu_custom_call.1
$region0: #{tpu_custom_call.1}
  #allocation0 [shape = 'u32[]', space=smem, size = 0x4, offset = 0x4, fixed_abs, tag = 'smem constant byte address 0x4 - core index']
  #allocation1 [shape = 'u32[144,128]{1,0:T(1,128)}', space=vmem, size = 0x12000, scoped, tag = 'internal scratch']
  %s0 = inlined_call_operand.hbm [shape: f32[8,128], index: 0, kind: input, shape index: {}]
  %s1 = inlined_call_operand.hbm [shape: f32[128,128], index: 1, kind: input, shape index: {}]
  %s2 = inlined_call_operand.vmem [shape: f32[1,128], index: 2, kind: input, shape index: {}]
  %s3 = inlined_call_operand.hbm [shape: f32[8,128], index: 3, kind: output, shape index: {}]
  %s4 = sld [smem:[#allocation0]]
  $region30: #{tpu_custom_call.1} parent=0
    _
  %s6 = ssub.s32 1, %s4
  %s7 = scalar_select 0, %s6, %s4
  $region1: #{tpu_custom_call.1} parent=0
    #allocation2 [shape = 'u8[4096]{0}', space=vmem, size = 0x1000, scoped, tag = 'input window, operand 0, single buffered']
    #allocation3 [shape = 's32[1]{0}', space=sflag, size = 0x4, scoped, tag = 'scoped memory for tpu_custom_call.1']
    #allocation4 [shape = 's32[1]{0}', space=sflag, size = 0x4, scoped, tag = 'scoped memory for tpu_custom_call.1']
    #allocation5 [shape = 'u8[65536]{0}', space=vmem, size = 0x10000, scoped, tag = 'input window, operand 1, single buffered']
    #allocation6 [shape = 's32[1]{0}', space=sflag, size = 0x4, scoped, tag = 'scoped memory for tpu_custom_call.1']
    #allocation7 [shape = 'u8[4096]{0}', space=vmem, size = 0x1000, scoped, tag = 'output window, operand 0, single buffered']
    %8 = vsyncpa [#allocation3], 0
    %9 = vsyncpa [#allocation6], 0
    %10 = vsyncpa [#allocation4], 0
    // Predicated region
    $region2: #{tpu_custom_call.1} parent=1 // pred_check
      _
    $region3: #{tpu_custom_call.1} parent=1 // pred_check_branch
      %12 = sbr.rel (0) target = $region5
    $region4: #{tpu_custom_call.1} parent=1 // pred_region
      %s14 = ssub.s32 128, 128
      %15 = vsyncadd [#allocation3], %s14
      %s17 = sshll.u32 [#allocation2], 4
      %s18 = int_to_ptr.vmem [resolvable:$true] %s17
      %20 = dma.hbm_to_vmem [thread:$0]  %s0, 128, %s18, [#allocation3]
    $region5: #{tpu_custom_call.1} parent=1 // pred_fallthru
      _
    // Predicated region
    $region6: #{tpu_custom_call.1} parent=1 // pred_check
      _
    $region7: #{tpu_custom_call.1} parent=1 // pred_check_branch
      %22 = sbr.rel (0) target = $region9
    $region8: #{tpu_custom_call.1} parent=1 // pred_region
      %s24 = ssub.s32 2048, 2048
      %25 = vsyncadd [#allocation6], %s24
      %s26 = sshll.u32 [#allocation5], 4
      %s27 = int_to_ptr.vmem [resolvable:$true] %s26
      %32 = dma.hbm_to_vmem [thread:$0]  %s1, 2048, %s27, [#allocation6], 128, 128, 8
    $region9: #{tpu_custom_call.1} parent=1 // pred_fallthru
      _
    // Predicated region
    $region10: #{tpu_custom_call.1} parent=1 // pred_check
      _
    $region11: #{tpu_custom_call.1} parent=1 // pred_check_branch
      %34 = sbr.rel (0) target = $region13
    $region12: #{tpu_custom_call.1} parent=1 // pred_region
      _
    $region13: #{tpu_custom_call.1} parent=1 // pred_fallthru
      _
    // Predicated region
    $region14: #{tpu_custom_call.1} parent=1 // pred_check
      _
    $region15: #{tpu_custom_call.1} parent=1 // pred_check_branch
      %36 = sbr.rel (0) target = $region17
    $region16: #{tpu_custom_call.1} parent=1 // pred_region
      %37 = dma.done [#allocation3], 128
    $region17: #{tpu_custom_call.1} parent=1 // pred_fallthru
      _
    // Predicated region
    $region18: #{tpu_custom_call.1} parent=1 // pred_check
      _
    $region19: #{tpu_custom_call.1} parent=1 // pred_check_branch
      %39 = sbr.rel (0) target = $region21
    $region20: #{tpu_custom_call.1} parent=1 // pred_region
      %40 = dma.done [#allocation6], 2048
    $region21: #{tpu_custom_call.1} parent=1 // pred_fallthru
      _
    %v41 = vld [vmem:[#allocation2] sm:$0xff]
    %v42 = vld [vmem:[#allocation5] sm:$0xff]
    %v43 = vld [vmem:[#allocation5 + $0x8] sm:$0xff]
    %v44 = vld [vmem:[#allocation5 + $0x10] sm:$0xff]
    %v45 = vld [vmem:[#allocation5 + $0x18] sm:$0xff]
    %v46 = vld [vmem:[#allocation5 + $0x20] sm:$0xff]
    %v47 = vld [vmem:[#allocation5 + $0x28] sm:$0xff]
    %v48 = vld [vmem:[#allocation5 + $0x30] sm:$0xff]
    %v49 = vld [vmem:[#allocation5 + $0x38] sm:$0xff]
    %v50 = vld [vmem:[#allocation5 + $0x40] sm:$0xff]
    %v51 = vld [vmem:[#allocation5 + $0x48] sm:$0xff]
    %v52 = vld [vmem:[#allocation5 + $0x50] sm:$0xff]
    %v53 = vld [vmem:[#allocation5 + $0x58] sm:$0xff]
    %v54 = vld [vmem:[#allocation5 + $0x60] sm:$0xff]
    %v55 = vld [vmem:[#allocation5 + $0x68] sm:$0xff]
    %v56 = vld [vmem:[#allocation5 + $0x70] sm:$0xff]
    %v57 = vld [vmem:[#allocation5 + $0x78] sm:$0xff]
    %v58 = vld [vmem:[%s2] sm:$0x1]
    %v60 = vlaneseq
    %v61 = vshrl.u32 %v60, 7
    %v62 = vsub.s32 0, %v61
    %v63 = vrot.slane %v58, %v62
    %65 = vmatprep.subr.mxu0 0.0
    %66 = vmatpush1.msra.mxu0 %v42
    %67 = vmatprep.subr.mxu0 0.0
    %68 = vmatpush1.msra.mxu0 %v43
    %69 = vmatprep.subr.mxu0 0.0
    %70 = vmatpush1.msra.mxu0 %v44
    %71 = vmatprep.subr.mxu0 0.0
    %72 = vmatpush1.msra.mxu0 %v45
    %73 = vmatprep.subr.mxu0 0.0
    %74 = vmatpush1.msra.mxu0 %v46
    %75 = vmatprep.subr.mxu0 0.0
    %76 = vmatpush1.msra.mxu0 %v47
    %77 = vmatprep.subr.mxu0 0.0
    %78 = vmatpush1.msra.mxu0 %v48
    %79 = vmatprep.subr.mxu0 0.0
    %80 = vmatpush1.msra.mxu0 %v49
    %81 = vmatprep.subr.mxu0 0.0
    %82 = vmatpush1.msra.mxu0 %v50
    %83 = vmatprep.subr.mxu0 0.0
    %84 = vmatpush1.msra.mxu0 %v51
    %85 = vmatprep.subr.mxu0 0.0
    %86 = vmatpush1.msra.mxu0 %v52
    %87 = vmatprep.subr.mxu0 0.0
    %88 = vmatpush1.msra.mxu0 %v53
    %89 = vmatprep.subr.mxu0 0.0
    %90 = vmatpush1.msra.mxu0 %v54
    %91 = vmatprep.subr.mxu0 0.0
    %92 = vmatpush1.msra.mxu0 %v55
    %93 = vmatprep.subr.mxu0 0.0
    %94 = vmatpush1.msra.mxu0 %v56
    %95 = vmatprep.subr.mxu0 0.0
    %96 = vmatpush1.msra.mxu0 %v57
    %97 = vmatprep.subr.mxu0 0.0
    %98 = vmatpush1.msra.mxu0 0.0
    %99 = vmatprep.subr.mxu0 0.0
    %100 = vmatpush1.msra.mxu0 0.0
    %101 = vmatprep.subr.mxu0 0.0
    %102 = vmatpush1.msra.mxu0 0.0
    %103 = vmatprep.subr.mxu0 0.0
    %104 = vmatpush1.msra.mxu0 0.0
    %105 = vmatprep.subr.mxu0 0.0
    %106 = vmatpush1.msra.mxu0 0.0
    %107 = vmatprep.subr.mxu0 0.0
    %108 = vmatpush1.msra.mxu0 0.0
    %109 = vmatprep.subr.mxu0 0.0
    %110 = vmatpush1.msra.mxu0 0.0
    %111 = vmatprep.subr.mxu0 0.0
    %112 = vmatpush1.msra.mxu0 0.0
    %113 = vmatprep.subr.mxu0 0.0
    %114 = vmatpush1.msra.mxu0 0.0
    %115 = vmatprep.subr.mxu0 0.0
    %116 = vmatpush1.msra.mxu0 0.0
    %117 = vmatprep.subr.mxu0 0.0
    %118 = vmatpush1.msra.mxu0 0.0
    %119 = vmatprep.subr.mxu0 0.0
    %120 = vmatpush1.msra.mxu0 0.0
    %121 = vmatprep.subr.mxu0 0.0
    %122 = vmatpush1.msra.mxu0 0.0
    %123 = vmatprep.subr.mxu0 0.0
    %124 = vmatpush1.msra.mxu0 0.0
    %125 = vmatprep.subr.mxu0 0.0
    %126 = vmatpush1.msra.mxu0 0.0
    %127 = vmatprep.subr.mxu0 0.0
    %128 = vmatpush1.msra.mxu0 0.0
    %129 = vmatprep.mubr.f32.mxu0 0.0
    %130 = vmatmul.mubr.f32.gmra.mrb[0].mxu0 %v41
    %v131 = vpop.f32.mrb[0].mxu0
    %v132 = vadd.f32 %v63, %v131
    %v133 = vpop.f32.mrb[0].mxu0
    %134 = vdwg.mxu0
    %135 = vst [vmem:[#allocation7] sm:$0xff] %v132
    // Predicated region
    $region22: #{tpu_custom_call.1} parent=1 // pred_check
      _
    $region23: #{tpu_custom_call.1} parent=1 // pred_check_branch
      %137 = sbr.rel (0) target = $region25
    $region24: #{tpu_custom_call.1} parent=1 // pred_region
      %s139 = ssub.s32 128, 128
      %140 = vsyncadd [#allocation4], %s139
      %s142 = sshll.u32 [#allocation7], 4
      %s143 = int_to_ptr.vmem [resolvable:$true] %s142
      %145 = dma.vmem_to_hbm [thread:$0]  %s143, 128, %s3, [#allocation4]
    $region25: #{tpu_custom_call.1} parent=1 // pred_fallthru
      _
    // Predicated region
    $region26: #{tpu_custom_call.1} parent=1 // pred_check
      _
    $region27: #{tpu_custom_call.1} parent=1 // pred_check_branch
      %147 = sbr.rel (0) target = $region29
    $region28: #{tpu_custom_call.1} parent=1 // pred_region
      %148 = dma.done [#allocation4], 128
    $region29: #{tpu_custom_call.1} parent=1 // pred_fallthru
      _
    %149 = vsyncpa [#allocation3], 1
    %150 = vsyncpa [#allocation6], 1
    %151 = vsyncpa [#allocation4], 1

</llo_original>
